<compile_context>
chip_gen: v7x
topology: tpu7x:2x2x1
jax: 0.10.0
libtpu: 0.0.40
codegen_flags: <defaults>
</compile_context>

<pallas_src>
import functools

import jax
import jax.numpy as jnp
import numpy as np
from jax.experimental import pallas as pl
from jax.experimental.pallas import tpu as pltpu


def _lrn_kernel(band_ref, x_ref, o_ref, *, beta):
    # band_ref: (C, C) banded matrix, already scaled by alpha / local_size (f32)
    # x_ref / o_ref blocks: (1, C, TILE_HW)
    x = x_ref[0]                                   # (C, TILE_HW)
    x2 = (x * x).astype(jnp.float32)

    # Channel window sum on the MXU (scaled by alpha/local_size):
    #   acc[c, s] = (alpha/local_size) * sum_{|c'-c|<=pad} x2[c', s]
    # The banded matrix encodes the AvgPool3d zero padding at channel edges
    # (count_include_pad=True -> always divide by local_size, folded in).
    acc = jnp.dot(band_ref[...], x2, preferred_element_type=jnp.float32)

    d = acc + 1.0                                  # d >= 1, well-conditioned

    if beta == 0.75:
        # d**-0.75 = rsqrt(d) * sqrt(rsqrt(d))  -> 2 EUP transcendentals
        inv = jax.lax.rsqrt(d)
        scale = inv * jnp.sqrt(inv)
    else:
        # general beta: d**-beta = exp(-beta * log(d)) -> 2 EUP transcendentals
        scale = jnp.exp(-beta * jnp.log(d))

    o_ref[0] = (x * scale).astype(o_ref.dtype)


def _vmem_budget_bytes():
    """Generation-aware working-set budget: ~half of physical VMEM."""
    try:
        phys = int(pltpu.get_tpu_info().vmem_capacity_bytes)
    except Exception:
        phys = 64 * 1024 * 1024   # conservative (v7x per-TC physical VMEM)
    return max(8 * 1024 * 1024, phys // 2)


def _choose_tile_hw(C, HW, N, budget_bytes):
    """Lane-dense spatial tile, as large as the VMEM budget allows."""
    hw128 = ((HW + 127) // 128) * 128
    # ~12 live f32 copies of a (C, tile) slab: double-buffered in + out blocks
    # (8 copies) plus ~4 in-kernel temps.
    per_lane_bytes = 12 * C * 4
    max_tile = budget_bytes // max(1, per_lane_bytes)
    max_tile = max(128, (max_tile // 128) * 128)
    tile = int(min(hw128, max_tile))
    # v7x has 2 TensorCores: keep at least 2 grid steps when the batch alone
    # would collapse the grid to a single step.
    if N == 1 and tile >= hw128 and hw128 > 128:
        tile = max(128, ((hw128 // 2 + 127) // 128) * 128)
    return tile


def lrn_across_channels(x, local_size=5, alpha=1e-4, beta=0.75):
    """Pallas LRN, ACROSS_CHANNELS=True. x: (N, C, H, W) float32."""
    assert local_size % 2 == 1, "local_size must be odd to preserve channel dim"
    N, C, H, W = x.shape
    HW = H * W
    pad = (local_size - 1) // 2

    xr = x.reshape(N, C, HW)        # no padding: ragged edge block is masked

    budget = _vmem_budget_bytes()
    tile_hw = _choose_tile_hw(C, HW, N, budget)
    n_spatial = pl.cdiv(HW, tile_hw)

    # Banded window-sum matrix, pre-scaled by alpha / local_size
    # (AvgPool3d count_include_pad=True => always divide by local_size).
    idx = jnp.arange(C)
    band = (jnp.abs(idx[:, None] - idx[None, :]) <= pad).astype(jnp.float32)
    band = band * (float(alpha) / float(local_size))

    kernel = functools.partial(_lrn_kernel, beta=float(beta))

    # Explicit, generation-safe scoped-VMEM limit sized to the working set.
    work_bytes = 12 * C * tile_hw * 4 + 2 * C * C * 4
    vmem_limit = int(min(budget, max(4 * work_bytes, 16 * 1024 * 1024)))

    cost = pl.CostEstimate(
        flops=2 * N * C * C * HW + 5 * N * C * HW,
        transcendentals=2 * N * C * HW,
        bytes_accessed=2 * N * C * HW * 4 + C * C * 4,
    )

    out = pl.pallas_call(
        kernel,
        out_shape=jax.ShapeDtypeStruct((N, C, HW), x.dtype),
        grid=(N, n_spatial),
        in_specs=[
            pl.BlockSpec((C, C), lambda n, s: (0, 0)),
            pl.BlockSpec((1, C, tile_hw), lambda n, s: (n, 0, s)),
        ],
        out_specs=pl.BlockSpec((1, C, tile_hw), lambda n, s: (n, 0, s)),
        compiler_params=pltpu.CompilerParams(
            dimension_semantics=("parallel", "parallel"),
            vmem_limit_bytes=vmem_limit,
        ),
        cost_estimate=cost,
    )(band, xr)

    return out.reshape(N, C, H, W)


def _lrn_reference(x, local_size=5, alpha=1e-4, beta=0.75):
    """Pure-JAX reference matching the PyTorch module semantics."""
    N, C, H, W = x.shape
    pad = (local_size - 1) // 2
    x2 = x * x
    x2p = jnp.pad(x2, ((0, 0), (pad, pad), (0, 0), (0, 0)))
    acc = sum(x2p[:, off:off + C] for off in range(local_size))
    div = (acc / local_size) * alpha + 1.0
    return x / jnp.power(div, beta)


if __name__ == "__main__":
    # Typical jigsaw-alexnet LRN hyperparameters.
    local_size, alpha, beta = 5, 1e-4, 0.75

    # Primary small test (spatial extent a multiple of the tile).
    x = jax.random.normal(jax.random.PRNGKey(0), (2, 4, 16, 16), dtype=jnp.float32)
    out = jax.block_until_ready(
        lrn_across_channels(x, local_size=local_size, alpha=alpha, beta=beta))
    ref = _lrn_reference(x, local_size=local_size, alpha=alpha, beta=beta)
    np.testing.assert_allclose(np.asarray(out), np.asarray(ref),
                               rtol=1e-5, atol=1e-5)

    # Ragged final spatial block (HW=225 not a multiple of 128) and the
    # N == 1 grid-splitting path: exercises masked edge-block stores.
    x2 = jax.random.normal(jax.random.PRNGKey(1), (1, 8, 15, 15), dtype=jnp.float32)
    out2 = jax.block_until_ready(
        lrn_across_channels(x2, local_size=local_size, alpha=alpha, beta=beta))
    ref2 = _lrn_reference(x2, local_size=local_size, alpha=alpha, beta=beta)
    np.testing.assert_allclose(np.asarray(out2), np.asarray(ref2),
                               rtol=1e-5, atol=1e-5)

    print("KERNEL_OK")
</pallas_src>

<mosaic_0001>
module attributes {stable_mosaic.version = 11 : i64} {
  func.func @_lrn_kernel(%arg0: i32, %arg1: i32, %arg2: memref<4x4xf32, #tpu.memory_space<vmem>>, %arg3: memref<1x4x256xf32, #tpu.memory_space<vmem>>, %arg4: memref<1x4x256xf32, #tpu.memory_space<vmem>>) attributes {dimension_semantics = [#tpu.dimension_semantics<parallel>, #tpu.dimension_semantics<parallel>], iteration_bounds = array<i64: 2, 1>, scalar_prefetch = 0 : i64, scratch_operands = 0 : i64, tpu.core_type = #tpu.core_type<tc>, window_params = [{pipeline_mode = #tpu.pipeline_mode<synchronous>, transform_indices = @transform_0, window_bounds = array<i64: 4, 4>}, {transform_indices = @transform_1, window_bounds = array<i64: 1, 4, 256>}, {transform_indices = @transform_2, window_bounds = array<i64: 1, 4, 256>}]} {
    %c0 = arith.constant 0 : index
    %c0_0 = arith.constant 0 : index
    %c0_1 = arith.constant 0 : index
    %0 = vector.load %arg3[%c0, %c0_0, %c0_1] : memref<1x4x256xf32, #tpu.memory_space<vmem>>, vector<1x4x256xf32>
    %1 = vector.shape_cast %0 : vector<1x4x256xf32> to vector<4x256xf32>
    %2 = arith.mulf %1, %1 : vector<4x256xf32>
    %c0_2 = arith.constant 0 : index
    %c0_3 = arith.constant 0 : index
    %3 = vector.load %arg2[%c0_2, %c0_3] : memref<4x4xf32, #tpu.memory_space<vmem>>, vector<4x4xf32>
    %cst = arith.constant dense<0.000000e+00> : vector<4x256xf32>
    %4 = tpu.matmul %3, %2, %cst {dimension_numbers = #tpu.dot_dimension_numbers<[1], [0], [0], [1], [0, 0, 1, 1], [], []>} : vector<4x4xf32>, vector<4x256xf32>, vector<4x256xf32> -> vector<4x256xf32>
    %cst_4 = arith.constant 1.000000e+00 : f32
    %5 = vector.broadcast %cst_4 : f32 to vector<4x256xf32>
    %6 = arith.addf %4, %5 : vector<4x256xf32>
    %7 = math.rsqrt %6 : vector<4x256xf32>
    %8 = math.sqrt %7 : vector<4x256xf32>
    %9 = arith.mulf %7, %8 : vector<4x256xf32>
    %10 = arith.mulf %1, %9 : vector<4x256xf32>
    %c0_5 = arith.constant 0 : index
    %c0_6 = arith.constant 0 : index
    %c0_7 = arith.constant 0 : index
    %11 = vector.load %arg4[%c0_5, %c0_6, %c0_7] : memref<1x4x256xf32, #tpu.memory_space<vmem>>, vector<1x4x256xf32>
    %12 = vector.shape_cast %11 : vector<1x4x256xf32> to vector<4x256xf32>
    %13 = vector.shape_cast %10 : vector<4x256xf32> to vector<1x4x256xf32>
    tpu.vector_store %arg4[%c0_5, %c0_6, %c0_7], %13 {strides = array<i32>} : memref<1x4x256xf32, #tpu.memory_space<vmem>>, vector<1x4x256xf32>,
    return
  }
  func.func @transform_0(%arg0: i32, %arg1: i32) -> (i32, i32) {
    %c0_i32 = arith.constant 0 : i32
    %c0_i32_0 = arith.constant 0 : i32
    %c0_i32_1 = arith.constant 0 : i32
    return %c0_i32, %c0_i32_0 : i32, i32
  }
  func.func @transform_1(%arg0: i32, %arg1: i32) -> (i32, i32, i32) {
    %c0_i32 = arith.constant 0 : i32
    %c0_i32_0 = arith.constant 0 : i32
    return %arg0, %c0_i32, %arg1 : i32, i32, i32
  }
  func.func @transform_2(%arg0: i32, %arg1: i32) -> (i32, i32, i32) {
    %c0_i32 = arith.constant 0 : i32
    %c0_i32_0 = arith.constant 0 : i32
    return %arg0, %c0_i32, %arg1 : i32, i32, i32
  }
}

</mosaic_0001>

<llo_original>
// kernel: tpu_custom_call.1
$region0: #{tpu_custom_call.1}
  #allocation0 [shape = 'u32[]', space=smem, size = 0x4, offset = 0x4, fixed_abs, tag = 'smem constant byte address 0x4 - core index']
  #allocation1 [shape = 'u32[144,128]{1,0:T(1,128)}', space=vmem, size = 0x12000, scoped, tag = 'internal scratch']
  %s0 = inlined_call_operand.hbm [shape: f32[4,4], index: 0, kind: input, shape index: {}]
  %s1 = inlined_call_operand.hbm [shape: f32[2,4,256], index: 1, kind: input, shape index: {}]
  %s2 = inlined_call_operand.hbm [shape: f32[2,4,256], index: 2, kind: output, shape index: {}]
  %s3 = sld [smem:[#allocation0]]
  $region49: #{tpu_custom_call.1} parent=0
    _
  %s5 = ssub.s32 1, %s3
  %s6 = scalar_select 0, %s5, %s3
  $region1: #{tpu_custom_call.1} parent=0
    #allocation2 [shape = 'u8[2048]{0}', space=vmem, size = 0x800, scoped, tag = 'input window, operand 0, single buffered']
    #allocation3 [shape = 's32[2]{0}', space=sflag, size = 0x8, scoped, tag = 'scoped memory for tpu_custom_call.1']
    #allocation4 [shape = 's32[2]{0}', space=sflag, size = 0x8, scoped, tag = 'scoped memory for tpu_custom_call.1']
    #allocation5 [shape = 'u8[8192]{0}', space=vmem, size = 0x2000, scoped, tag = 'input window, operand 1']
    #allocation6 [shape = 's32[2]{0}', space=sflag, size = 0x8, scoped, tag = 'scoped memory for tpu_custom_call.1']
    #allocation7 [shape = 'u8[8192]{0}', space=vmem, size = 0x2000, scoped, tag = 'output window, operand 0']
    %7 = vsyncpa [#allocation3], 0
    %8 = vsyncpa [#allocation6], 0
    %s9 = scalar_lea.sflag [#allocation6], 1
    %10 = vsyncpa %s9, 0
    %11 = vsyncpa [#allocation4], 0
    %s12 = scalar_lea.sflag [#allocation4], 1
    %13 = vsyncpa %s12, 0
    loop: start=0, step=1, limit=4
    $region2: #{tpu_custom_call.1} parent=1 // loop_pre_header
      _
    $region3: #{tpu_custom_call.1} parent=1 // loop_header
      %s15 = sphi 0, %s19
      %p16 = scmp.ge.s32.totalorder %s15, 4
      %s22 = sphi 0, %s34
      %s23 = sphi 0, %s30
      %s24 = sphi 0, %s22
      %s25 = sphi 0, %s23
      %s26 = sphi 0, %s24
      %s27 = sphi 0, %s25
      %s35 = sphi 0, %s35
      %s37 = sphi 0, %s35
      %s38 = sphi 0, %s37
      %s52 = sphi 0, %s38
      %s60 = sphi 0, %s62
      %s63 = sphi 0, %s60
      %s64 = sphi 0, %s63
      %s80 = sphi 0, %s64
      %s88 = sphi 0, %s90
      %s91 = sphi 0, %s88
      %s92 = sphi 0, %s91
      %s108 = sphi 0, %s92
    $region4: #{tpu_custom_call.1} parent=1 // loop_header_branch
      %18 = sbr.rel (%p16) target = $region8
    $region5: #{tpu_custom_call.1} parent=1 // loop_body
      %s20 = ssub.s32 %s15, 1
      %s21 = ssub.s32 %s15, 2
      %s28 = sadd.s32 1, %s23
      %p29 = scmp.ge.s32.totalorder %s28, 1
      %s30 = scalar_select %p29, 0, %s28
      %s31 = sadd.s32 1, %s22
      %s32 = scalar_select %p29, %s31, %s22
      %p33 = scmp.ge.s32.totalorder %s32, 2
      %s34 = scalar_select %p33, 0, %s32
      %s36 = sadd.s32 %s35, 1
      %p39 = scmp.eq.s32.totalorder %s15, 1
      %p40 = scmp.ne.s32.totalorder %s35, %s37
      %p41 = scmp.eq.s32.totalorder %s15, 0
      %p42 = por %p40, %p41
      %p43 = scmp.ne.s32.totalorder %s35, %s37
      %p44 = scmp.eq.s32.totalorder %s20, 1
      %p45 = por %p43, %p44
      %p46 = scmp.ne.s32.totalorder %s37, %s38
      %p47 = scmp.eq.s32.totalorder %s20, 0
      %p48 = por %p46, %p47
      %p49 = scmp.ne.s32.totalorder %s37, %s38
      %p50 = scmp.eq.s32.totalorder %s21, 1
      %p51 = por %p49, %p50
      %p53 = scmp.ne.s32.totalorder %s38, %s52
      %p54 = scmp.eq.s32.totalorder %s21, 0
      %p55 = por %p53, %p54
      %s56 = ssub.s32 %s22, %s34
      %s57 = ssub.s32 %s23, %s30
      %s58 = sor.u32 %s56, %s57
      %p59 = scmp.eq.s32.totalorder %s58, 0
      %s61 = sadd.s32 %s60, 1
      %s62 = scalar_select %p59, %s60, %s61
      %p65 = pneg %p59
      %p66 = scmp.eq.s32.totalorder %s15, 1
      %p67 = por %p65, %p66
      %p68 = scmp.ne.s32.totalorder %s60, %s63
      %p69 = scmp.eq.s32.totalorder %s15, 0
      %p70 = por %p68, %p69
      %p71 = scmp.ne.s32.totalorder %s60, %s63
      %p72 = scmp.eq.s32.totalorder %s20, 1
      %p73 = por %p71, %p72
      %p74 = scmp.ne.s32.totalorder %s63, %s64
      %p75 = scmp.eq.s32.totalorder %s20, 0
      %p76 = por %p74, %p75
      %p77 = scmp.ne.s32.totalorder %s63, %s64
      %p78 = scmp.eq.s32.totalorder %s21, 1
      %p79 = por %p77, %p78
      %p81 = scmp.ne.s32.totalorder %s64, %s80
      %p82 = scmp.eq.s32.totalorder %s21, 0
      %p83 = por %p81, %p82
      %s84 = ssub.s32 %s22, %s34
      %s85 = ssub.s32 %s23, %s30
      %s86 = sor.u32 %s84, %s85
      %p87 = scmp.eq.s32.totalorder %s86, 0
      %s89 = sadd.s32 %s88, 1
      %s90 = scalar_select %p87, %s88, %s89
      %p93 = pneg %p87
      %p94 = scmp.eq.s32.totalorder %s15, 1
      %p95 = por %p93, %p94
      %p96 = scmp.ne.s32.totalorder %s88, %s91
      %p97 = scmp.eq.s32.totalorder %s15, 0
      %p98 = por %p96, %p97
      %p99 = scmp.ne.s32.totalorder %s88, %s91
      %p100 = scmp.eq.s32.totalorder %s20, 1
      %p101 = por %p99, %p100
      %p102 = scmp.ne.s32.totalorder %s91, %s92
      %p103 = scmp.eq.s32.totalorder %s20, 0
      %p104 = por %p102, %p103
      %p105 = scmp.ne.s32.totalorder %s91, %s92
      %p106 = scmp.eq.s32.totalorder %s21, 1
      %p107 = por %p105, %p106
      %p109 = scmp.ne.s32.totalorder %s92, %s108
      %p110 = scmp.eq.s32.totalorder %s21, 0
      %p111 = por %p109, %p110
      %p112 = scmp.le.s32.totalorder 1, %s15
      %p113 = scmp.lt.s32.totalorder %s15, 3
      %p114 = pnand %p112, %p113
      %p115 = pneg %p114
      // Predicated region
      $region9: #{tpu_custom_call.1} parent=5 // pred_check
        _
      $region10: #{tpu_custom_call.1} parent=5 // pred_check_branch
        %117 = sbr.rel (%p114) target = $region12
      $region11: #{tpu_custom_call.1} parent=5 // pred_region
        %s118 = ssub.s32 %s15, 1
        // Predicated region
        $region13: #{tpu_custom_call.1} parent=11 // pred_check
          %p119 = pneg %p48
        $region14: #{tpu_custom_call.1} parent=11 // pred_check_branch
          %121 = sbr.rel (%p119) target = $region16
        $region15: #{tpu_custom_call.1} parent=11 // pred_region
          %s123 = ssub.s32 64, 64
          %124 = vsyncadd [#allocation3], %s123
          %s126 = sshll.u32 [#allocation2], 4
          %s127 = int_to_ptr.vmem [resolvable:$true] %s126
          %129 = dma.hbm_to_vmem [thread:$0]  %s0, 64, %s127, [#allocation3]
        $region16: #{tpu_custom_call.1} parent=11 // pred_fallthru
          _
      $region12: #{tpu_custom_call.1} parent=5 // pred_fallthru
        _
      %p130 = scmp.lt.s32.totalorder %s15, 2
      // Predicated region
      $region17: #{tpu_custom_call.1} parent=5 // pred_check
        %p131 = pneg %p130
      $region18: #{tpu_custom_call.1} parent=5 // pred_check_branch
        %133 = sbr.rel (%p131) target = $region20
      $region19: #{tpu_custom_call.1} parent=5 // pred_region
        // Predicated region
        $region21: #{tpu_custom_call.1} parent=19 // pred_check
          %p134 = pneg %p70
        $region22: #{tpu_custom_call.1} parent=19 // pred_check_branch
          %136 = sbr.rel (%p134) target = $region24
        $region23: #{tpu_custom_call.1} parent=19 // pred_region
          %s137 = sand.u32 %s60, 1
          %s138 = scalar_lea.sflag [#allocation6], %s137
          %s139 = sand.u32 %s60, 1
          %s140 = smul.addr %s139, 8
          %s141 = scalar_lea.vmem [#allocation5], %s140
          %s142 = smul.u32 2, %s23
          %s144 = ssub.s32 128, 128
          %145 = vsyncadd %s138, %s144
          %s146 = smul.addr %s22, 2
          %s147 = sadd.s32 %s142, %s146
          %s148 = smul.addr %s147, 64
          %s149 = scalar_lea.hbm %s1, %s148
          %s151 = sshll.u32 %s141, 4
          %s152 = int_to_ptr.vmem [resolvable:$true] %s151
          %154 = dma.hbm_to_vmem [thread:$0]  %s149, 128, %s152, %s138
        $region24: #{tpu_custom_call.1} parent=19 // pred_fallthru
          _
      $region20: #{tpu_custom_call.1} parent=5 // pred_fallthru
        _
      %p155 = scmp.le.s32.totalorder 1, %s15
      %p156 = scmp.lt.s32.totalorder %s15, 3
      %p157 = pnand %p155, %p156
      %p158 = pneg %p157
      // Predicated region
      $region25: #{tpu_custom_call.1} parent=5 // pred_check
        _
      $region26: #{tpu_custom_call.1} parent=5 // pred_check_branch
        %160 = sbr.rel (%p157) target = $region28
      $region27: #{tpu_custom_call.1} parent=5 // pred_region
        %s161 = ssub.s32 %s15, 1
        // Predicated region
        $region29: #{tpu_custom_call.1} parent=27 // pred_check
          %p162 = pneg %p48
        $region30: #{tpu_custom_call.1} parent=27 // pred_check_branch
          %164 = sbr.rel (%p162) target = $region32
        $region31: #{tpu_custom_call.1} parent=27 // pred_region
          %165 = dma.done [#allocation3], 64
        $region32: #{tpu_custom_call.1} parent=27 // pred_fallthru
          _
        %s166 = sand.u32 %s63, 1
        %s167 = scalar_lea.sflag [#allocation6], %s166
        %s168 = sand.u32 %s63, 1
        %s169 = smul.addr %s168, 8
        %s170 = scalar_lea.vmem [#allocation5], %s169
        // Predicated region
        $region33: #{tpu_custom_call.1} parent=27 // pred_check
          %p171 = pneg %p76
        $region34: #{tpu_custom_call.1} parent=27 // pred_check_branch
          %173 = sbr.rel (%p171) target = $region36
        $region35: #{tpu_custom_call.1} parent=27 // pred_region
          %174 = dma.done %s167, 128
        $region36: #{tpu_custom_call.1} parent=27 // pred_fallthru
          _
        %p175 = pneg %p48
        %p176 = pneg %p45
        %s177 = sand.u32 %s63, 1
        %s178 = scalar_lea.sflag [#allocation6], %s177
        %s179 = sand.u32 %s63, 1
        %s180 = smul.addr %s179, 8
        %s181 = scalar_lea.vmem [#allocation5], %s180
        %p182 = pneg %p76
        %p183 = pneg %p73
        %p184 = pneg %p104
        %p185 = pneg %p101
        %s186 = sand.u32 %s91, 1
        %s187 = scalar_lea.sflag [#allocation4], %s186
        %s188 = sand.u32 %s91, 1
        %s189 = smul.addr %s188, 8
        %s190 = scalar_lea.vmem [#allocation7], %s189
        %s191 = smul.u32 2, %s25
        %s192 = smul.u32 2, %s25
        %v193 = vld [vmem:[%s170] sm:$0xff]
        %v194 = vmul.f32 %v193, %v193
        %v195 = vld [vmem:[#allocation2] sm:$0xf]
        %v197 = vcombine.high %v194, %v194
        %vm198 = vcmask 31744
        %v200 = vsel %vm198, %v195, 0
        %vm202 = vcmask 1043456
        %v203 = vsel %vm202, %v194, 0
        %v205 = vsel %vm202, %v197, 0
        %207 = vmatprep.subr.mxu0 %v205
        %208 = vmatpush1.msra.mxu0 %v203
        %209 = vmatprep.subr.mxu0 0.0
        %210 = vmatpush1.msra.mxu0 0.0
        %211 = vmatprep.subr.mxu0 0.0
        %212 = vmatpush1.msra.mxu0 0.0
        %213 = vmatprep.subr.mxu0 0.0
        %214 = vmatpush1.msra.mxu0 0.0
        %215 = vmatprep.subr.mxu0 0.0
        %216 = vmatpush1.msra.mxu0 0.0
        %217 = vmatprep.subr.mxu0 0.0
        %218 = vmatpush1.msra.mxu0 0.0
        %219 = vmatprep.subr.mxu0 0.0
        %220 = vmatpush1.msra.mxu0 0.0
        %221 = vmatprep.subr.mxu0 0.0
        %222 = vmatpush1.msra.mxu0 0.0
        %223 = vmatprep.subr.mxu0 0.0
        %224 = vmatpush1.msra.mxu0 0.0
        %225 = vmatprep.subr.mxu0 0.0
        %226 = vmatpush1.msra.mxu0 0.0
        %227 = vmatprep.subr.mxu0 0.0
        %228 = vmatpush1.msra.mxu0 0.0
        %229 = vmatprep.subr.mxu0 0.0
        %230 = vmatpush1.msra.mxu0 0.0
        %231 = vmatprep.subr.mxu0 0.0
        %232 = vmatpush1.msra.mxu0 0.0
        %233 = vmatprep.subr.mxu0 0.0
        %234 = vmatpush1.msra.mxu0 0.0
        %235 = vmatprep.subr.mxu0 0.0
        %236 = vmatpush1.msra.mxu0 0.0
        %237 = vmatprep.subr.mxu0 0.0
        %238 = vmatpush1.msra.mxu0 0.0
        %239 = vmatprep.subr.mxu0 0.0
        %240 = vmatpush1.msra.mxu0 0.0
        %241 = vmatprep.subr.mxu0 0.0
        %242 = vmatpush1.msra.mxu0 0.0
        %243 = vmatprep.subr.mxu0 0.0
        %244 = vmatpush1.msra.mxu0 0.0
        %245 = vmatprep.subr.mxu0 0.0
        %246 = vmatpush1.msra.mxu0 0.0
        %247 = vmatprep.subr.mxu0 0.0
        %248 = vmatpush1.msra.mxu0 0.0
        %249 = vmatprep.subr.mxu0 0.0
        %250 = vmatpush1.msra.mxu0 0.0
        %251 = vmatprep.subr.mxu0 0.0
        %252 = vmatpush1.msra.mxu0 0.0
        %253 = vmatprep.subr.mxu0 0.0
        %254 = vmatpush1.msra.mxu0 0.0
        %255 = vmatprep.subr.mxu0 0.0
        %256 = vmatpush1.msra.mxu0 0.0
        %257 = vmatprep.subr.mxu0 0.0
        %258 = vmatpush1.msra.mxu0 0.0
        %259 = vmatprep.subr.mxu0 0.0
        %260 = vmatpush1.msra.mxu0 0.0
        %261 = vmatprep.subr.mxu0 0.0
        %262 = vmatpush1.msra.mxu0 0.0
        %263 = vmatprep.subr.mxu0 0.0
        %264 = vmatpush1.msra.mxu0 0.0
        %265 = vmatprep.subr.mxu0 0.0
        %266 = vmatpush1.msra.mxu0 0.0
        %267 = vmatprep.subr.mxu0 0.0
        %268 = vmatpush1.msra.mxu0 0.0
        %269 = vmatprep.subr.mxu0 0.0
        %270 = vmatpush1.msra.mxu0 0.0
        %271 = vmatprep.mubr.f32.mxu0 0.0
        %272 = vmatmul.mubr.f32.gmra.mrb[0].mxu0 %v200
        %v273 = vpop.f32.mrb[0].mxu0
        %v274 = vadd.f32 1.0, %v273
        %v275 = vpop.f32.mrb[0].mxu0
        %v276 = vadd.f32 1.0, %v275
        %277 = vdwg.mxu0
        %v278 = vrsqrt.pop %v274
        %v279 = vrsqrt.pop %v276
        %v280 = vrsqrt.pop %v278
        %v281 = vmul.f32 %v278, %v280
        %vm282 = vcmp.eq.f32.partialorder %v278, inf
        %v283 = vsel %vm282, %v278, %v281
        %vm284 = vcmp.eq.f32.partialorder %v278, 0.0
        %v285 = vand.u32 %v278, 2147483648
        %v286 = vsel %vm284, %v285, %v283
        %v287 = vrsqrt.pop %v279
        %v288 = vmul.f32 %v279, %v287
        %vm289 = vcmp.eq.f32.partialorder %v279, inf
        %v290 = vsel %vm289, %v279, %v288
        %vm291 = vcmp.eq.f32.partialorder %v279, 0.0
        %v292 = vand.u32 %v279, 2147483648
        %v293 = vsel %vm291, %v292, %v290
        %v294 = vmul.f32 %v278, %v286
        %v295 = vmul.f32 %v279, %v293
        %v298 = vcombine.low %v294, %v295
        %v300 = vmul.f32 %v193, %v298
        %301 = vst [vmem:[%s190] sm:$0xff] %v300
        %s302 = sand.u32 %s91, 1
        %s303 = scalar_lea.sflag [#allocation4], %s302
        %s304 = sand.u32 %s91, 1
        %s305 = smul.addr %s304, 8
        %s306 = scalar_lea.vmem [#allocation7], %s305
        // Predicated region
        $region37: #{tpu_custom_call.1} parent=27 // pred_check
          %p307 = pneg %p101
        $region38: #{tpu_custom_call.1} parent=27 // pred_check_branch
          %309 = sbr.rel (%p307) target = $region40
        $region39: #{tpu_custom_call.1} parent=27 // pred_region
          %s310 = smul.u32 2, %s25
          %s312 = ssub.s32 128, 128
          %313 = vsyncadd %s303, %s312
          %s314 = smul.addr %s24, 2
          %s315 = sadd.s32 %s310, %s314
          %s316 = smul.addr %s315, 64
          %s317 = scalar_lea.hbm %s2, %s316
          %s319 = sshll.u32 %s306, 4
          %s320 = int_to_ptr.vmem [resolvable:$true] %s319
          %322 = dma.vmem_to_hbm [thread:$0]  %s320, 128, %s317, %s303
        $region40: #{tpu_custom_call.1} parent=27 // pred_fallthru
          _
      $region28: #{tpu_custom_call.1} parent=5 // pred_fallthru
        _
      %p323 = scmp.le.s32.totalorder 2, %s15
      // Predicated region
      $region41: #{tpu_custom_call.1} parent=5 // pred_check
        %p324 = pneg %p323
      $region42: #{tpu_custom_call.1} parent=5 // pred_check_branch
        %326 = sbr.rel (%p324) target = $region44
      $region43: #{tpu_custom_call.1} parent=5 // pred_region
        %s327 = ssub.s32 %s15, 2
        // Predicated region
        $region45: #{tpu_custom_call.1} parent=43 // pred_check
          %p328 = pneg %p107
        $region46: #{tpu_custom_call.1} parent=43 // pred_check_branch
          %330 = sbr.rel (%p328) target = $region48
        $region47: #{tpu_custom_call.1} parent=43 // pred_region
          %s331 = sand.u32 %s92, 1
          %s332 = scalar_lea.sflag [#allocation4], %s331
          %s333 = sand.u32 %s92, 1
          %s334 = smul.addr %s333, 8
          %s335 = scalar_lea.vmem [#allocation7], %s334
          %336 = dma.done %s332, 128
        $region48: #{tpu_custom_call.1} parent=43 // pred_fallthru
          _
      $region44: #{tpu_custom_call.1} parent=5 // pred_fallthru
        _
    $region6: #{tpu_custom_call.1} parent=1 // loop_footer
      %s19 = sadd.s32 1, %s15
    $region7: #{tpu_custom_call.1} parent=1 // loop_footer_branch
      %14 = sbr.rel target = $region3
    $region8: #{tpu_custom_call.1} parent=1 // loop_exit
      _
    %337 = vsyncpa [#allocation3], 1
    %s338 = scalar_lea.sflag [#allocation3], 1
    %339 = vsyncpa %s338, 1
    %340 = vsyncpa [#allocation6], 1
    %s341 = scalar_lea.sflag [#allocation6], 1
    %342 = vsyncpa %s341, 1
    %343 = vsyncpa [#allocation4], 1
    %s344 = scalar_lea.sflag [#allocation4], 1
    %345 = vsyncpa %s344, 1

</llo_original>
